<compile_context>
chip_gen: v7x
topology: tpu7x:2x2x1
jax: 0.10.0
libtpu: 0.0.40
codegen_flags: <defaults>
</compile_context>

<pallas_src>
import functools

import jax
import jax.numpy as jnp
from jax.experimental import pallas as pl
from jax.experimental.pallas import tpu as pltpu


_LANE = 128
_SUB = 32                                   # row granule legal for f32/bf16/i8
_TARGET_BLOCK_BYTES = 12 * 1024 * 1024      # summed over the 3 input blocks


def _round_up(x, m):
    return ((x + m - 1) // m) * m


def _fold_to_8_rows(v):
    """Sum a (tm, tc) value into (8, tc) over aligned 8-row groups (pure VPU)."""
    tm = v.shape[0]
    out = v[0:8, :]
    for k in range(1, tm // 8):
        out = out + v[k * 8:(k + 1) * 8, :]
    return out


def _masked_bce_kernel(logits_ref, targets_ref, mask_ref,
                       loss_part_ref, mask_part_ref,
                       loss_acc_ref, mask_acc_ref,
                       *, rows, cols, tm, tc, mask_rows, mask_cols):
    i = pl.program_id(0)      # row-block axis ("parallel": megacore split)
    j = pl.program_id(1)      # column axis   ("arbitrary": accumulation)

    # Fresh accumulators for every row block (also resets state left over from
    # a previous row block handled by the same core).
    @pl.when(j == 0)
    def _():
        loss_acc_ref[...] = jnp.zeros_like(loss_acc_ref)
        mask_acc_ref[...] = jnp.zeros_like(mask_acc_ref)

    # Stream native dtypes from HBM; widen per block on the VPU.
    x = logits_ref[...].astype(jnp.float32)
    t = targets_ref[...].astype(jnp.float32)
    m = mask_ref[...].astype(jnp.float32)

    # sigmoid via tanh: one EUP push instead of exp + reciprocal.
    p = 0.5 * (jnp.tanh(0.5 * x) + 1.0)
    lp = jnp.log(p + 1e-7)
    lq = jnp.log(1.0 - p + 1e-7)
    # torch loss = -(t*lp + (1-t)*lq) = -(lq + t*(lp - lq)); the leading
    # negation is folded into the finalize write below.
    contrib = (lq + t * (lp - lq)) * m

    # Ragged-tail blocks: discard out-of-bounds contributions with a select
    # (jnp.where selects, so garbage-driven NaN/inf can never leak through).
    if mask_rows or mask_cols:
        valid = None
        if mask_rows:
            r = jax.lax.broadcasted_iota(jnp.int32, (tm, tc), 0) + i * tm
            valid = r < rows
        if mask_cols:
            c = jax.lax.broadcasted_iota(jnp.int32, (tm, tc), 1) + j * tc
            vcol = c < cols
            valid = vcol if valid is None else (valid & vcol)
        contrib = jnp.where(valid, contrib, 0.0)
        m = jnp.where(valid, m, 0.0)

    # Pure-VPU accumulate into small (8, tc) accumulators (same add count as a
    # full-block accumulator, ~tm/8x less accumulator read-modify-write).
    if tm % 8 == 0:
        contrib = _fold_to_8_rows(contrib)
        m = _fold_to_8_rows(m)
    loss_acc_ref[...] += contrib
    mask_acc_ref[...] += m

    # One small cross-lane reduction per row block; write a lane-dense
    # (1, 8, 128) partial tile (the wrapper reads element [i, 0, 0]).
    @pl.when(j == pl.num_programs(1) - 1)
    def _():
        ones = jnp.ones(loss_part_ref.shape, jnp.float32)
        loss_part_ref[...] = (-jnp.sum(loss_acc_ref[...])) * ones
        mask_part_ref[...] = jnp.sum(mask_acc_ref[...]) * ones


def _block_geometry(rows, cols, sum_itemsize, block_rows, block_cols):
    """Pick (tm, tc) targeting ~_TARGET_BLOCK_BYTES of input per grid step."""
    target_elems = max(_SUB * _LANE,
                       _TARGET_BLOCK_BYTES // max(int(sum_itemsize), 1))

    # --- columns ---
    if block_cols is not None:
        tc = block_cols
    elif rows * cols <= target_elems:
        tc = cols                              # whole array in one block
    elif rows <= 4 * _SUB:
        # Flat/wide input: few rows, so grow the column block (multiples of
        # 128, possibly past 2048) until the byte budget is met.
        rows_al = max(8, _round_up(rows, 8))
        tc = max(_LANE, (target_elems // rows_al) // _LANE * _LANE)
        tc = cols if tc >= cols else tc
    else:
        tc = cols if cols <= 2048 else 2048    # tall input: bound cols, tile rows

    # --- rows ---
    if block_rows is not None:
        tm = block_rows                        # should be a multiple of 8
    else:
        tm_budget = max(_SUB, (target_elems // max(tc, 1)) // _SUB * _SUB)
        tm = rows if tm_budget >= rows else tm_budget
    return tm, tc


@functools.partial(jax.jit,
                   static_argnames=("reduction", "block_rows", "block_cols"))
def masked_bce_with_logits_loss(logits, targets, mask, reduction="mean",
                                block_rows=None, block_cols=None):
    """Pallas-backed equivalent of MaskedBCEWithLogitsLoss.forward.

    Pass targets/mask as bf16/int8/bool when possible: the kernel streams
    native dtypes from HBM, so narrower inputs directly reduce HBM bytes.
    """
    if logits.ndim == 0:
        raise ValueError("logits must have at least one dimension")

    # Collapse leading dims: a free view (no HBM copy, no pad, no dtype cast).
    cols = logits.shape[-1]
    rows = 1
    for d in logits.shape[:-1]:
        rows *= d
    l2 = logits.reshape(rows, cols)
    t2 = targets.reshape(rows, cols)
    m2 = mask.reshape(rows, cols)

    sum_itemsize = (l2.dtype.itemsize + t2.dtype.itemsize + m2.dtype.itemsize)
    tm, tc = _block_geometry(rows, cols, sum_itemsize, block_rows, block_cols)
    nrb = pl.cdiv(rows, tm)
    ncb = pl.cdiv(cols, tc)
    acc_rows = 8 if tm % 8 == 0 else tm

    kernel = functools.partial(
        _masked_bce_kernel,
        rows=rows, cols=cols, tm=tm, tc=tc,
        mask_rows=(rows % tm) != 0, mask_cols=(cols % tc) != 0)

    loss_part, mask_part = pl.pallas_call(
        kernel,
        out_shape=(jax.ShapeDtypeStruct((nrb, 8, _LANE), jnp.float32),
                   jax.ShapeDtypeStruct((nrb, 8, _LANE), jnp.float32)),
        grid_spec=pltpu.PrefetchScalarGridSpec(
            num_scalar_prefetch=0,
            grid=(nrb, ncb),
            in_specs=[pl.BlockSpec((tm, tc), lambda i, j: (i, j)),
                      pl.BlockSpec((tm, tc), lambda i, j: (i, j)),
                      pl.BlockSpec((tm, tc), lambda i, j: (i, j))],
            out_specs=[pl.BlockSpec((1, 8, _LANE), lambda i, j: (i, 0, 0)),
                       pl.BlockSpec((1, 8, _LANE), lambda i, j: (i, 0, 0))],
            scratch_shapes=[pltpu.VMEM((acc_rows, tc), jnp.float32),
                            pltpu.VMEM((acc_rows, tc), jnp.float32)],
        ),
        compiler_params=pltpu.CompilerParams(
            dimension_semantics=("parallel", "arbitrary"),
            vmem_limit_bytes=48 * 1024 * 1024),
    )(l2, t2, m2)

    # Tiny final reduction over per-row-block partials (negation already
    # folded into the kernel's finalize write).
    loss_sum = jnp.sum(loss_part[:, 0, 0])
    mask_sum = jnp.sum(mask_part[:, 0, 0])

    if reduction == "mean":
        # NOTE: all-zero mask -> 0/0 -> NaN, matching the torch reference.
        return loss_sum / mask_sum
    elif reduction == "sum":
        return loss_sum
    # TODO(synk): reduction='none' (elementwise loss map) not implemented;
    # the reference module is only used with 'mean'/'sum'.
    raise NotImplementedError("reduction must be 'mean' or 'sum'")


def _reference(logits, targets, mask, reduction="mean"):
    p = jax.nn.sigmoid(logits.astype(jnp.float32))
    t = targets.astype(jnp.float32)
    m = mask.astype(jnp.float32)
    loss = -(t * jnp.log(p + 1e-7) + (1.0 - t) * jnp.log(1.0 - p + 1e-7))
    loss = loss * m
    if reduction == "mean":
        return jnp.sum(loss) / jnp.sum(m)
    return jnp.sum(loss)


if __name__ == "__main__":
    key = jax.random.PRNGKey(0)
    k1, k2, k3, k4, k5, k6 = jax.random.split(key, 6)

    # --- Test 1: typical (batch, seq) float32 case, ragged sequence mask ----
    batch, seq = 8, 200  # deliberately not lane-aligned
    logits = jax.random.normal(k1, (batch, seq), dtype=jnp.float32) * 2.0
    targets = (jax.random.uniform(k2, (batch, seq)) > 0.5).astype(jnp.float32)
    lengths = jax.random.randint(k3, (batch, 1), 50, seq + 1)
    mask = (jnp.arange(seq)[None, :] < lengths).astype(jnp.float32)

    out = masked_bce_with_logits_loss(logits, targets, mask, reduction="mean")
    out = jax.block_until_ready(out)
    ref = _reference(logits, targets, mask, reduction="mean")
    assert jnp.allclose(out, ref, rtol=1e-4, atol=1e-5), (out, ref)

    out_s = masked_bce_with_logits_loss(logits, targets, mask, reduction="sum")
    out_s = jax.block_until_ready(out_s)
    ref_s = _reference(logits, targets, mask, reduction="sum")
    assert jnp.allclose(out_s, ref_s, rtol=1e-4, atol=1e-3), (out_s, ref_s)

    # --- Test 2: forced multi-block grid (2x3), ragged tails on both axes,
    #             narrow (bf16) streams, exercises the parallel row split ----
    r2, c2 = 37, 300  # neither divides the (32, 128) blocks below
    logits2 = (jax.random.normal(k4, (r2, c2), dtype=jnp.float32) * 3.0
               ).astype(jnp.bfloat16)
    targets2 = (jax.random.uniform(k5, (r2, c2)) > 0.5).astype(jnp.bfloat16)
    mask2 = (jax.random.uniform(k6, (r2, c2)) > 0.3).astype(jnp.bfloat16)

    out2 = masked_bce_with_logits_loss(logits2, targets2, mask2,
                                       reduction="mean",
                                       block_rows=32, block_cols=128)
    out2 = jax.block_until_ready(out2)
    ref2 = _reference(logits2, targets2, mask2, reduction="mean")
    assert jnp.allclose(out2, ref2, rtol=1e-4, atol=1e-5), (out2, ref2)

    print("KERNEL_OK")
</pallas_src>

<mosaic_0001>
module attributes {stable_mosaic.version = 11 : i64} {
  func.func @_masked_bce_kernel(%arg0: i32, %arg1: i32, %arg2: memref<8x200xf32, #tpu.memory_space<vmem>>, %arg3: memref<8x200xf32, #tpu.memory_space<vmem>>, %arg4: memref<8x200xf32, #tpu.memory_space<vmem>>, %arg5: memref<1x8x128xf32, #tpu.memory_space<vmem>>, %arg6: memref<1x8x128xf32, #tpu.memory_space<vmem>>, %arg7: memref<8x200xf32, #tpu.memory_space<vmem>>, %arg8: memref<8x200xf32, #tpu.memory_space<vmem>>) attributes {dimension_semantics = [#tpu.dimension_semantics<parallel>, #tpu.dimension_semantics<arbitrary>], iteration_bounds = array<i64: 1, 1>, scalar_prefetch = 0 : i64, scratch_operands = 2 : i64, tpu.core_type = #tpu.core_type<tc>, window_params = [{transform_indices = @transform_0, window_bounds = array<i64: 8, 200>}, {transform_indices = @transform_1, window_bounds = array<i64: 8, 200>}, {transform_indices = @transform_2, window_bounds = array<i64: 8, 200>}, {transform_indices = @transform_3, window_bounds = array<i64: 1, 8, 128>}, {transform_indices = @transform_4, window_bounds = array<i64: 1, 8, 128>}]} {
    %c0_i32 = arith.constant 0 : i32
    %0 = arith.cmpi eq, %arg1, %c0_i32 : i32
    %1 = arith.extui %0 : i1 to i32
    %c0_i32_0 = arith.constant 0 : i32
    %2 = arith.cmpi ne, %1, %c0_i32_0 : i32
    scf.if %2 {
      %cst_21 = arith.constant 0.000000e+00 : f32
      %34 = vector.broadcast %cst_21 : f32 to vector<8x200xf32>
      %c0_22 = arith.constant 0 : index
      %c0_23 = arith.constant 0 : index
      %35 = vector.load %arg7[%c0_22, %c0_23] : memref<8x200xf32, #tpu.memory_space<vmem>>, vector<8x200xf32>
      tpu.vector_store %arg7[%c0_22, %c0_23], %34 {strides = array<i32>} : memref<8x200xf32, #tpu.memory_space<vmem>>, vector<8x200xf32>,
      %cst_24 = arith.constant 0.000000e+00 : f32
      %36 = vector.broadcast %cst_24 : f32 to vector<8x200xf32>
      %c0_25 = arith.constant 0 : index
      %c0_26 = arith.constant 0 : index
      %37 = vector.load %arg8[%c0_25, %c0_26] : memref<8x200xf32, #tpu.memory_space<vmem>>, vector<8x200xf32>
      tpu.vector_store %arg8[%c0_25, %c0_26], %36 {strides = array<i32>} : memref<8x200xf32, #tpu.memory_space<vmem>>, vector<8x200xf32>,
    } else {
    }
    %c0 = arith.constant 0 : index
    %c0_1 = arith.constant 0 : index
    %3 = vector.load %arg2[%c0, %c0_1] : memref<8x200xf32, #tpu.memory_space<vmem>>, vector<8x200xf32>
    %c0_2 = arith.constant 0 : index
    %c0_3 = arith.constant 0 : index
    %4 = vector.load %arg3[%c0_2, %c0_3] : memref<8x200xf32, #tpu.memory_space<vmem>>, vector<8x200xf32>
    %c0_4 = arith.constant 0 : index
    %c0_5 = arith.constant 0 : index
    %5 = vector.load %arg4[%c0_4, %c0_5] : memref<8x200xf32, #tpu.memory_space<vmem>>, vector<8x200xf32>
    %cst = arith.constant 5.000000e-01 : f32
    %6 = vector.broadcast %cst : f32 to vector<8x200xf32>
    %7 = arith.mulf %6, %3 : vector<8x200xf32>
    %8 = math.tanh %7 : vector<8x200xf32>
    %cst_6 = arith.constant 1.000000e+00 : f32
    %9 = vector.broadcast %cst_6 : f32 to vector<8x200xf32>
    %10 = arith.addf %8, %9 : vector<8x200xf32>
    %cst_7 = arith.constant 5.000000e-01 : f32
    %11 = vector.broadcast %cst_7 : f32 to vector<8x200xf32>
    %12 = arith.mulf %11, %10 : vector<8x200xf32>
    %cst_8 = arith.constant 1.000000e-07 : f32
    %13 = vector.broadcast %cst_8 : f32 to vector<8x200xf32>
    %14 = arith.addf %12, %13 : vector<8x200xf32>
    %15 = math.log %14 : vector<8x200xf32>
    %cst_9 = arith.constant 1.000000e+00 : f32
    %16 = vector.broadcast %cst_9 : f32 to vector<8x200xf32>
    %17 = arith.subf %16, %12 : vector<8x200xf32>
    %cst_10 = arith.constant 1.000000e-07 : f32
    %18 = vector.broadcast %cst_10 : f32 to vector<8x200xf32>
    %19 = arith.addf %17, %18 : vector<8x200xf32>
    %20 = math.log %19 : vector<8x200xf32>
    %21 = arith.subf %15, %20 : vector<8x200xf32>
    %22 = arith.mulf %4, %21 : vector<8x200xf32>
    %23 = arith.addf %20, %22 : vector<8x200xf32>
    %24 = arith.mulf %23, %5 : vector<8x200xf32>
    %c0_11 = arith.constant 0 : index
    %c0_12 = arith.constant 0 : index
    %25 = vector.load %arg7[%c0_11, %c0_12] : memref<8x200xf32, #tpu.memory_space<vmem>>, vector<8x200xf32>
    %26 = arith.addf %25, %24 : vector<8x200xf32>
    %c0_13 = arith.constant 0 : index
    %c0_14 = arith.constant 0 : index
    %27 = vector.load %arg7[%c0_13, %c0_14] : memref<8x200xf32, #tpu.memory_space<vmem>>, vector<8x200xf32>
    tpu.vector_store %arg7[%c0_13, %c0_14], %26 {strides = array<i32>} : memref<8x200xf32, #tpu.memory_space<vmem>>, vector<8x200xf32>,
    %c0_15 = arith.constant 0 : index
    %c0_16 = arith.constant 0 : index
    %28 = vector.load %arg8[%c0_15, %c0_16] : memref<8x200xf32, #tpu.memory_space<vmem>>, vector<8x200xf32>
    %29 = arith.addf %28, %5 : vector<8x200xf32>
    %c0_17 = arith.constant 0 : index
    %c0_18 = arith.constant 0 : index
    %30 = vector.load %arg8[%c0_17, %c0_18] : memref<8x200xf32, #tpu.memory_space<vmem>>, vector<8x200xf32>
    tpu.vector_store %arg8[%c0_17, %c0_18], %29 {strides = array<i32>} : memref<8x200xf32, #tpu.memory_space<vmem>>, vector<8x200xf32>,
    %c0_i32_19 = arith.constant 0 : i32
    %31 = arith.cmpi eq, %arg1, %c0_i32_19 : i32
    %32 = arith.extui %31 : i1 to i32
    %c0_i32_20 = arith.constant 0 : i32
    %33 = arith.cmpi ne, %32, %c0_i32_20 : i32
    scf.if %33 {
      %cst_21 = arith.constant 1.000000e+00 : f32
      %34 = vector.broadcast %cst_21 : f32 to vector<1x8x128xf32>
      %c0_22 = arith.constant 0 : index
      %c0_23 = arith.constant 0 : index
      %35 = vector.load %arg7[%c0_22, %c0_23] : memref<8x200xf32, #tpu.memory_space<vmem>>, vector<8x200xf32>
      %36 = vector.shape_cast %35 : vector<8x200xf32> to vector<1x8x200xf32>
      %cst_24 = arith.constant dense<0.000000e+00> : vector<1xf32>
      %37 = vector.multi_reduction <add>, %36, %cst_24 [1, 2] : vector<1x8x200xf32> to vector<1xf32>
      %38 = vector.shape_cast %37 : vector<1xf32> to vector<1x1x1xf32>
      %39 = vector.extract %38[0, 0, 0] : f32 from vector<1x1x1xf32>
      %cst_25 = arith.constant 0.000000e+00 : f32
      %40 = arith.subf %cst_25, %39 : f32
      %41 = vector.broadcast %40 : f32 to vector<1x8x128xf32>
      %42 = arith.mulf %41, %34 : vector<1x8x128xf32>
      %c0_26 = arith.constant 0 : index
      %c0_27 = arith.constant 0 : index
      %c0_28 = arith.constant 0 : index
      %43 = vector.load %arg5[%c0_26, %c0_27, %c0_28] : memref<1x8x128xf32, #tpu.memory_space<vmem>>, vector<1x8x128xf32>
      tpu.vector_store %arg5[%c0_26, %c0_27, %c0_28], %42 {strides = array<i32>} : memref<1x8x128xf32, #tpu.memory_space<vmem>>, vector<1x8x128xf32>,
      %c0_29 = arith.constant 0 : index
      %c0_30 = arith.constant 0 : index
      %44 = vector.load %arg8[%c0_29, %c0_30] : memref<8x200xf32, #tpu.memory_space<vmem>>, vector<8x200xf32>
      %45 = vector.shape_cast %44 : vector<8x200xf32> to vector<1x8x200xf32>
      %cst_31 = arith.constant dense<0.000000e+00> : vector<1xf32>
      %46 = vector.multi_reduction <add>, %45, %cst_31 [1, 2] : vector<1x8x200xf32> to vector<1xf32>
      %47 = vector.shape_cast %46 : vector<1xf32> to vector<1x1x1xf32>
      %48 = vector.extract %47[0, 0, 0] : f32 from vector<1x1x1xf32>
      %49 = vector.broadcast %48 : f32 to vector<1x8x128xf32>
      %50 = arith.mulf %49, %34 : vector<1x8x128xf32>
      %c0_32 = arith.constant 0 : index
      %c0_33 = arith.constant 0 : index
      %c0_34 = arith.constant 0 : index
      %51 = vector.load %arg6[%c0_32, %c0_33, %c0_34] : memref<1x8x128xf32, #tpu.memory_space<vmem>>, vector<1x8x128xf32>
      tpu.vector_store %arg6[%c0_32, %c0_33, %c0_34], %50 {strides = array<i32>} : memref<1x8x128xf32, #tpu.memory_space<vmem>>, vector<1x8x128xf32>,
    } else {
    }
    return
  }
  func.func @transform_0(%arg0: i32, %arg1: i32) -> (i32, i32) {
    %c0_i32 = arith.constant 0 : i32
    return %arg0, %arg1 : i32, i32
  }
  func.func @transform_1(%arg0: i32, %arg1: i32) -> (i32, i32) {
    %c0_i32 = arith.constant 0 : i32
    return %arg0, %arg1 : i32, i32
  }
  func.func @transform_2(%arg0: i32, %arg1: i32) -> (i32, i32) {
    %c0_i32 = arith.constant 0 : i32
    return %arg0, %arg1 : i32, i32
  }
  func.func @transform_3(%arg0: i32, %arg1: i32) -> (i32, i32, i32) {
    %c0_i32 = arith.constant 0 : i32
    %c0_i32_0 = arith.constant 0 : i32
    %c0_i32_1 = arith.constant 0 : i32
    return %arg0, %c0_i32, %c0_i32_0 : i32, i32, i32
  }
  func.func @transform_4(%arg0: i32, %arg1: i32) -> (i32, i32, i32) {
    %c0_i32 = arith.constant 0 : i32
    %c0_i32_0 = arith.constant 0 : i32
    %c0_i32_1 = arith.constant 0 : i32
    return %arg0, %c0_i32, %c0_i32_0 : i32, i32, i32
  }
}

</mosaic_0001>

<llo_original>
// kernel: masked_bce_with_logits_loss.1
$region0: #{masked_bce_with_logits_loss.1}
  #allocation0 [shape = 'u32[]', space=smem, size = 0x4, offset = 0x4, fixed_abs, tag = 'smem constant byte address 0x4 - core index']
  #allocation1 [shape = 'u32[144,128]{1,0:T(1,128)}', space=vmem, size = 0x12000, scoped, tag = 'internal scratch']
  #allocation2 [shape = 'f32[8,200]{1,0:T(8,128)}', space=vmem, size = 0x2000, scoped, tag = 'scratch operand']
  #allocation3 [shape = 'f32[8,200]{1,0:T(8,128)}', space=vmem, size = 0x2000, scoped, tag = 'scratch operand']
  %s0 = inlined_call_operand.hbm [shape: f32[8,200], index: 0, kind: input, shape index: {}]
  %s1 = inlined_call_operand.hbm [shape: f32[8,200], index: 1, kind: input, shape index: {}]
  %s2 = inlined_call_operand.hbm [shape: f32[8,200], index: 2, kind: input, shape index: {}]
  %s3 = inlined_call_operand.vmem [shape: f32[1,8,128], index: 3, kind: output, shape index: {0}]
  %s4 = inlined_call_operand.vmem [shape: f32[1,8,128], index: 4, kind: output, shape index: {1}]
  %5 = xla_tuple %s3, %s4
  %s6 = sld [smem:[#allocation0]]
  $region50: #{masked_bce_with_logits_loss.1} parent=0
    _
  %s8 = ssub.s32 1, %s6
  %s9 = scalar_select 0, %s8, %s6
  $region1: #{masked_bce_with_logits_loss.1} parent=0
    #allocation4 [shape = 'u8[8192]{0}', space=vmem, size = 0x2000, scoped, tag = 'input window, operand 0, single buffered']
    #allocation5 [shape = 's32[1]{0}', space=sflag, size = 0x4, scoped, tag = 'scoped memory for masked_bce_with_logits_loss.1']
    #allocation6 [shape = 'u8[8192]{0}', space=vmem, size = 0x2000, scoped, tag = 'input window, operand 1, single buffered']
    #allocation7 [shape = 's32[1]{0}', space=sflag, size = 0x4, scoped, tag = 'scoped memory for masked_bce_with_logits_loss.1']
    #allocation8 [shape = 'u8[8192]{0}', space=vmem, size = 0x2000, scoped, tag = 'input window, operand 2, single buffered']
    %10 = vsyncpa [#allocation5], 0
    %11 = vsyncpa [#allocation7], 0
    // Predicated region
    $region2: #{masked_bce_with_logits_loss.1} parent=1 // pred_check
      _
    $region3: #{masked_bce_with_logits_loss.1} parent=1 // pred_check_branch
      %13 = sbr.rel (0) target = $region5
    $region4: #{masked_bce_with_logits_loss.1} parent=1 // pred_region
      %s15 = ssub.s32 256, 256
      %16 = vsyncadd [#allocation5], %s15
      %s18 = sshll.u32 [#allocation4], 4
      %s19 = int_to_ptr.vmem [resolvable:$true] %s18
      %21 = dma.hbm_to_vmem [thread:$0]  %s0, 256, %s19, [#allocation5]
    $region5: #{masked_bce_with_logits_loss.1} parent=1 // pred_fallthru
      _
    // Predicated region
    $region6: #{masked_bce_with_logits_loss.1} parent=1 // pred_check
      _
    $region7: #{masked_bce_with_logits_loss.1} parent=1 // pred_check_branch
      %23 = sbr.rel (0) target = $region9
    $region8: #{masked_bce_with_logits_loss.1} parent=1 // pred_region
      %s25 = ssub.s32 256, 256
      %26 = vsyncadd [#allocation7], %s25
      %s28 = sshll.u32 [#allocation6], 4
      %s29 = int_to_ptr.vmem [resolvable:$true] %s28
      %31 = dma.hbm_to_vmem [thread:$0]  %s1, 256, %s29, [#allocation7]
    $region9: #{masked_bce_with_logits_loss.1} parent=1 // pred_fallthru
      _
    // Predicated region
    $region10: #{masked_bce_with_logits_loss.1} parent=1 // pred_check
      _
    $region11: #{masked_bce_with_logits_loss.1} parent=1 // pred_check_branch
      %33 = sbr.rel (0) target = $region13
    $region12: #{masked_bce_with_logits_loss.1} parent=1 // pred_region
      %s35 = ssub.s32 256, 256
      %36 = vsyncadd [#allocation7], %s35
      %s38 = sshll.u32 [#allocation8], 4
      %s39 = int_to_ptr.vmem [resolvable:$true] %s38
      %41 = dma.hbm_to_vmem [thread:$0]  %s2, 256, %s39, [#allocation7]
    $region13: #{masked_bce_with_logits_loss.1} parent=1 // pred_fallthru
      _
    // Predicated region
    $region14: #{masked_bce_with_logits_loss.1} parent=1 // pred_check
      _
    $region15: #{masked_bce_with_logits_loss.1} parent=1 // pred_check_branch
      %43 = sbr.rel (0) target = $region17
    $region16: #{masked_bce_with_logits_loss.1} parent=1 // pred_region
      %44 = dma.done [#allocation5], 256
    $region17: #{masked_bce_with_logits_loss.1} parent=1 // pred_fallthru
      _
    // Predicated region
    $region18: #{masked_bce_with_logits_loss.1} parent=1 // pred_check
      _
    $region19: #{masked_bce_with_logits_loss.1} parent=1 // pred_check_branch
      %46 = sbr.rel (0) target = $region21
    $region20: #{masked_bce_with_logits_loss.1} parent=1 // pred_region
      %47 = dma.done [#allocation7], 256
    $region21: #{masked_bce_with_logits_loss.1} parent=1 // pred_fallthru
      _
    // Predicated region
    $region22: #{masked_bce_with_logits_loss.1} parent=1 // pred_check
      _
    $region23: #{masked_bce_with_logits_loss.1} parent=1 // pred_check_branch
      %49 = sbr.rel (0) target = $region25
    $region24: #{masked_bce_with_logits_loss.1} parent=1 // pred_region
      %50 = dma.done [#allocation7], 256
    $region25: #{masked_bce_with_logits_loss.1} parent=1 // pred_fallthru
      _
    %p51 = scmp.eq.s32.totalorder 0, 0
    // Predicated region
    $region26: #{masked_bce_with_logits_loss.1} parent=1 // pred_check
      %p52 = pneg %p51
    $region27: #{masked_bce_with_logits_loss.1} parent=1 // pred_check_branch
      %54 = sbr.rel (%p52) target = $region29
    $region28: #{masked_bce_with_logits_loss.1} parent=1 // pred_region
      %55 = vst [vmem:[#allocation2] sm:$0xff] 0.0
      %vm56 = vcmask 588800
      %57 = vst.msk [vmem:[#allocation2 + $0x8] sm:$0xff] %vm56, 0.0
      %58 = vst [vmem:[#allocation3] sm:$0xff] 0.0
      %59 = vst.msk [vmem:[#allocation3 + $0x8] sm:$0xff] %vm56, 0.0
    $region29: #{masked_bce_with_logits_loss.1} parent=1 // pred_fallthru
      _
    %v60 = vld [vmem:[#allocation4] sm:$0xff]
    %v61 = vld [vmem:[#allocation4 + $0x8] sm:$0xff]
    %v62 = vld [vmem:[#allocation6] sm:$0xff]
    %v63 = vld [vmem:[#allocation6 + $0x8] sm:$0xff]
    %v64 = vld [vmem:[#allocation8] sm:$0xff]
    %v65 = vld [vmem:[#allocation8 + $0x8] sm:$0xff]
    %v66 = vmul.f32 %v60, 0.5
    %v67 = vmul.f32 %v61, 0.5
    %v68 = vtanh.pop %v66
    %v69 = vtanh.pop %v67
    %v70 = vadd.f32 %v68, 1.0
    %v71 = vadd.f32 %v69, 1.0
    %v72 = vmul.f32 %v70, 0.5
    %v73 = vmul.f32 %v71, 0.5
    %v74 = vadd.f32 %v72, 1e-07
    %v75 = vadd.f32 %v73, 1e-07
    %v76 = vlog2.pop %v74
    %v77 = vmul.f32 %v76, 0.6931472
    %v78 = vlog2.pop %v75
    %v79 = vmul.f32 %v78, 0.6931472
    %v80 = vsub.f32 1.0, %v72
    %v81 = vsub.f32 1.0, %v73
    %v82 = vadd.f32 %v80, 1e-07
    %v83 = vadd.f32 %v81, 1e-07
    %v84 = vlog2.pop %v82
    %v85 = vmul.f32 %v84, 0.6931472
    %v86 = vlog2.pop %v83
    %v87 = vmul.f32 %v86, 0.6931472
    %v88 = vsub.f32 %v77, %v85
    %v89 = vsub.f32 %v79, %v87
    %v90 = vmul.f32 %v62, %v88
    %v91 = vmul.f32 %v63, %v89
    %v92 = vadd.f32 %v85, %v90
    %v93 = vadd.f32 %v87, %v91
    %v94 = vmul.f32 %v92, %v64
    %v95 = vmul.f32 %v93, %v65
    %v96 = vld [vmem:[#allocation2] sm:$0xff]
    %v97 = vld [vmem:[#allocation2 + $0x8] sm:$0xff]
    %v98 = vadd.f32 %v96, %v94
    %v99 = vadd.f32 %v97, %v95
    %100 = vst [vmem:[#allocation2] sm:$0xff] %v98
    %vm101 = vcmask 588800
    %102 = vst.msk [vmem:[#allocation2 + $0x8] sm:$0xff] %vm101, %v99
    %v103 = vld [vmem:[#allocation3] sm:$0xff]
    %v104 = vld [vmem:[#allocation3 + $0x8] sm:$0xff]
    %v105 = vadd.f32 %v103, %v64
    %v106 = vadd.f32 %v104, %v65
    %107 = vst [vmem:[#allocation3] sm:$0xff] %v105
    %108 = vst.msk [vmem:[#allocation3 + $0x8] sm:$0xff] %vm101, %v106
    // Predicated region
    $region30: #{masked_bce_with_logits_loss.1} parent=1 // pred_check
      %p109 = pneg %p51
    $region31: #{masked_bce_with_logits_loss.1} parent=1 // pred_check_branch
      %111 = sbr.rel (%p109) target = $region33
    $region32: #{masked_bce_with_logits_loss.1} parent=1 // pred_region
      %v112 = vld [vmem:[#allocation2] sm:$0xff]
      %v113 = vld [vmem:[#allocation2 + $0x8] sm:$0xff]
      %v114 = vsel %vm101, %v113, 0.0
      %v115 = vadd.f32 %v112, %v114
      %116 = vadd.xlane.f32.xlu0 %v115
      %v117 = vpop.xlane.xlu0 %116
      %v118 = vrot.slane %v117, 4
      %v119 = vadd.f32 %v117, %v118
      %v120 = vrot.slane %v119, 2
      %v121 = vadd.f32 %v119, %v120
      %v122 = vrot.slane %v121, 1
      %v123 = vadd.f32 %v121, %v122
      %s124 = vtos %v123
      %s125 = ssub.f32 0.0, %s124
      %v126 = vstv %s125
      %127 = vst [vmem:[%s3] sm:$0xff] %v126
      %v128 = vld [vmem:[#allocation3] sm:$0xff]
      %v129 = vld [vmem:[#allocation3 + $0x8] sm:$0xff]
      %v130 = vsel %vm101, %v129, 0.0
      %v131 = vadd.f32 %v128, %v130
      %132 = vadd.xlane.f32.xlu0 %v131
      %v133 = vpop.xlane.xlu0 %132
      %v134 = vrot.slane %v133, 4
      %v135 = vadd.f32 %v133, %v134
      %v136 = vrot.slane %v135, 2
      %v137 = vadd.f32 %v135, %v136
      %v138 = vrot.slane %v137, 1
      %v139 = vadd.f32 %v137, %v138
      %s140 = vtos %v139
      %v141 = vstv %s140
      %142 = vst [vmem:[%s4] sm:$0xff] %v141
    $region33: #{masked_bce_with_logits_loss.1} parent=1 // pred_fallthru
      _
    // Predicated region
    $region34: #{masked_bce_with_logits_loss.1} parent=1 // pred_check
      _
    $region35: #{masked_bce_with_logits_loss.1} parent=1 // pred_check_branch
      %144 = sbr.rel (0) target = $region37
    $region36: #{masked_bce_with_logits_loss.1} parent=1 // pred_region
      _
    $region37: #{masked_bce_with_logits_loss.1} parent=1 // pred_fallthru
      _
    // Predicated region
    $region38: #{masked_bce_with_logits_loss.1} parent=1 // pred_check
      _
    $region39: #{masked_bce_with_logits_loss.1} parent=1 // pred_check_branch
      %146 = sbr.rel (0) target = $region41
    $region40: #{masked_bce_with_logits_loss.1} parent=1 // pred_region
      _
    $region41: #{masked_bce_with_logits_loss.1} parent=1 // pred_fallthru
      _
    // Predicated region
    $region42: #{masked_bce_with_logits_loss.1} parent=1 // pred_check
      _
    $region43: #{masked_bce_with_logits_loss.1} parent=1 // pred_check_branch
      %148 = sbr.rel (0) target = $region45
    $region44: #{masked_bce_with_logits_loss.1} parent=1 // pred_region
      _
    $region45: #{masked_bce_with_logits_loss.1} parent=1 // pred_fallthru
      _
    // Predicated region
    $region46: #{masked_bce_with_logits_loss.1} parent=1 // pred_check
      _
    $region47: #{masked_bce_with_logits_loss.1} parent=1 // pred_check_branch
      %150 = sbr.rel (0) target = $region49
    $region48: #{masked_bce_with_logits_loss.1} parent=1 // pred_region
      _
    $region49: #{masked_bce_with_logits_loss.1} parent=1 // pred_fallthru
      _
    %151 = vsyncpa [#allocation5], 1
    %152 = vsyncpa [#allocation7], 1

</llo_original>
